<compile_context>
chip_gen: v7x
topology: tpu7x:2x2x1
jax: 0.10.0
libtpu: 0.0.40
codegen_flags: <defaults>
</compile_context>

<pallas_src>
import jax
import jax.numpy as jnp
import numpy as np
from jax.experimental import pallas as pl
from jax.experimental.pallas import tpu as pltpu


def _width_attn_kernel(x_ref, xt_ref, g_ref, o_ref):
    # x_ref : (D, TQ)  query features for this width tile   (D = C*H)
    # xt_ref: (D, W)   key features (full width)
    # g_ref : (D, W)   value features (full width)
    # o_ref : (D, TQ)  output features for this width tile
    x = x_ref[...]
    xt = xt_ref[...]

    # scores[q, k] = sum_d x[d, q] * xt[d, k]   -> (TQ, W), f32 accumulation
    s = jax.lax.dot_general(
        x, xt,
        dimension_numbers=(((0,), (0,)), ((), ())),
        preferred_element_type=jnp.float32,
    )

    # numerically stable softmax over the key axis (f32)
    m = jnp.max(s, axis=-1, keepdims=True)
    e = jnp.exp(s - m)
    l = jnp.sum(e, axis=-1, keepdims=True)
    p = (e / l).astype(g_ref.dtype)                      # (TQ, W)

    # out[d, q] = sum_k g[d, k] * p[q, k]   -> (D, TQ), f32 accumulation
    o = jax.lax.dot_general(
        g_ref[...], p,
        dimension_numbers=(((1,), (1,)), ((), ())),
        preferred_element_type=jnp.float32,
    )
    o_ref[...] = o.astype(o_ref.dtype)


def vector_att_block_width_pallas(x_, x_t, g_x):
    """x_, x_t, g_x: (B, C, H, W). Returns (B, C, H, W)."""
    B, C, H, W = x_.shape
    D = C * H

    # Free contiguous reshapes (no HBM transpose passes).
    xf = x_.reshape(B, D, W)
    xtf = x_t.reshape(B, D, W)
    gf = g_x.reshape(B, D, W)

    # Query (width) tiling: full width unless it is large and 128-divisible.
    if W > 512 and W % 128 == 0:
        q_tile = 128
    else:
        q_tile = W
    num_q = W // q_tile

    out_flat = pl.pallas_call(
        _width_attn_kernel,
        out_shape=jax.ShapeDtypeStruct((B, D, W), x_.dtype),
        grid_spec=pltpu.PrefetchScalarGridSpec(
            num_scalar_prefetch=0,
            grid=(B, num_q),
            in_specs=[
                # queries: tile along width
                pl.BlockSpec((pl.Squeezed(), D, q_tile), lambda b, q: (b, 0, q)),
                # keys: full width, block index constant across q -> no re-fetch
                pl.BlockSpec((pl.Squeezed(), D, W), lambda b, q: (b, 0, 0)),
                # values: full width
                pl.BlockSpec((pl.Squeezed(), D, W), lambda b, q: (b, 0, 0)),
            ],
            out_specs=pl.BlockSpec((pl.Squeezed(), D, q_tile), lambda b, q: (b, 0, q)),
        ),
        compiler_params=pltpu.CompilerParams(
            dimension_semantics=("parallel", "parallel"),
            vmem_limit_bytes=64 << 20,
        ),
    )(xf, xtf, gf)

    # Free reshape back to NCHW.
    return out_flat.reshape(B, C, H, W)


def _reference_numpy(x_, x_t, g_x):
    """float64 host reference mirroring the PyTorch forward."""
    x_ = np.asarray(x_, dtype=np.float64)
    x_t = np.asarray(x_t, dtype=np.float64)
    g_x = np.asarray(g_x, dtype=np.float64)
    B, C, H, W = x_.shape
    q = np.transpose(x_, (0, 3, 2, 1)).reshape(B, W, H * C)
    k = np.transpose(x_t, (0, 3, 2, 1)).reshape(B, W, H * C)
    v = np.transpose(g_x, (0, 3, 2, 1)).reshape(B, W, H * C)
    s = np.einsum("bqd,bkd->bqk", q, k)
    s = s - s.max(axis=-1, keepdims=True)
    e = np.exp(s)
    p = e / e.sum(axis=-1, keepdims=True)
    out = np.einsum("bqk,bkd->bqd", p, v)
    out = out.reshape(B, W, H, C)
    return np.transpose(out, (0, 3, 2, 1))


if __name__ == "__main__":
    key = jax.random.PRNGKey(0)
    k1, k2, k3 = jax.random.split(key, 3)

    B, C, H, W = 2, 4, 16, 16
    x_ = jax.random.normal(k1, (B, C, H, W), dtype=jnp.float32)
    x_t = jax.random.normal(k2, (B, C, H, W), dtype=jnp.float32)
    g_x = jax.random.normal(k3, (B, C, H, W), dtype=jnp.float32)

    out = vector_att_block_width_pallas(x_, x_t, g_x)
    out = jax.block_until_ready(out)

    ref = _reference_numpy(x_, x_t, g_x)
    np.testing.assert_allclose(np.asarray(out, dtype=np.float64), ref,
                               rtol=2e-3, atol=2e-3)

    print("KERNEL_OK")
</pallas_src>

<mosaic_0001>
module attributes {stable_mosaic.version = 11 : i64} {
  func.func @_width_attn_kernel(%arg0: i32, %arg1: i32, %arg2: memref<1x64x16xf32, #tpu.memory_space<vmem>>, %arg3: memref<1x64x16xf32, #tpu.memory_space<vmem>>, %arg4: memref<1x64x16xf32, #tpu.memory_space<vmem>>, %arg5: memref<1x64x16xf32, #tpu.memory_space<vmem>>) attributes {dimension_semantics = [#tpu.dimension_semantics<parallel>, #tpu.dimension_semantics<parallel>], iteration_bounds = array<i64: 2, 1>, scalar_prefetch = 0 : i64, scratch_operands = 0 : i64, tpu.core_type = #tpu.core_type<tc>, window_params = [{transform_indices = @transform_0, window_bounds = array<i64: 1, 64, 16>}, {transform_indices = @transform_1, window_bounds = array<i64: 1, 64, 16>}, {transform_indices = @transform_2, window_bounds = array<i64: 1, 64, 16>}, {transform_indices = @transform_3, window_bounds = array<i64: 1, 64, 16>}]} {
    %c0 = arith.constant 0 : index
    %c0_0 = arith.constant 0 : index
    %c0_1 = arith.constant 0 : index
    %0 = vector.load %arg2[%c0, %c0_0, %c0_1] : memref<1x64x16xf32, #tpu.memory_space<vmem>>, vector<1x64x16xf32>
    %1 = vector.shape_cast %0 : vector<1x64x16xf32> to vector<64x16xf32>
    %c0_2 = arith.constant 0 : index
    %c0_3 = arith.constant 0 : index
    %c0_4 = arith.constant 0 : index
    %2 = vector.load %arg3[%c0_2, %c0_3, %c0_4] : memref<1x64x16xf32, #tpu.memory_space<vmem>>, vector<1x64x16xf32>
    %3 = vector.shape_cast %2 : vector<1x64x16xf32> to vector<64x16xf32>
    %cst = arith.constant dense<0.000000e+00> : vector<16x16xf32>
    %4 = tpu.matmul %1, %3, %cst {dimension_numbers = #tpu.dot_dimension_numbers<[0], [0], [1], [1], [0, 1, 1, 1], [], []>} : vector<64x16xf32>, vector<64x16xf32>, vector<16x16xf32> -> vector<16x16xf32>
    %cst_5 = arith.constant dense<0xFF800000> : vector<16xf32>
    %5 = vector.multi_reduction <maximumf>, %4, %cst_5 [1] : vector<16x16xf32> to vector<16xf32>
    %6 = vector.shape_cast %5 : vector<16xf32> to vector<16x1xf32>
    %7 = vector.broadcast %6 : vector<16x1xf32> to vector<16x16xf32>
    %8 = arith.subf %4, %7 : vector<16x16xf32>
    %9 = math.exp %8 : vector<16x16xf32>
    %cst_6 = arith.constant dense<0.000000e+00> : vector<16xf32>
    %10 = vector.multi_reduction <add>, %9, %cst_6 [1] : vector<16x16xf32> to vector<16xf32>
    %11 = vector.shape_cast %10 : vector<16xf32> to vector<16x1xf32>
    %12 = vector.broadcast %11 : vector<16x1xf32> to vector<16x16xf32>
    %13 = arith.divf %9, %12 : vector<16x16xf32>
    %c0_7 = arith.constant 0 : index
    %c0_8 = arith.constant 0 : index
    %c0_9 = arith.constant 0 : index
    %14 = vector.load %arg4[%c0_7, %c0_8, %c0_9] : memref<1x64x16xf32, #tpu.memory_space<vmem>>, vector<1x64x16xf32>
    %15 = vector.shape_cast %14 : vector<1x64x16xf32> to vector<64x16xf32>
    %cst_10 = arith.constant dense<0.000000e+00> : vector<64x16xf32>
    %16 = tpu.matmul %15, %13, %cst_10 {dimension_numbers = #tpu.dot_dimension_numbers<[1], [1], [0], [0], [0, 0, 1, 0], [], []>} : vector<64x16xf32>, vector<16x16xf32>, vector<64x16xf32> -> vector<64x16xf32>
    %c0_11 = arith.constant 0 : index
    %c0_12 = arith.constant 0 : index
    %c0_13 = arith.constant 0 : index
    %17 = vector.load %arg5[%c0_11, %c0_12, %c0_13] : memref<1x64x16xf32, #tpu.memory_space<vmem>>, vector<1x64x16xf32>
    %18 = vector.shape_cast %17 : vector<1x64x16xf32> to vector<64x16xf32>
    %19 = vector.shape_cast %16 : vector<64x16xf32> to vector<1x64x16xf32>
    tpu.vector_store %arg5[%c0_11, %c0_12, %c0_13], %19 {strides = array<i32>} : memref<1x64x16xf32, #tpu.memory_space<vmem>>, vector<1x64x16xf32>,
    return
  }
  func.func @transform_0(%arg0: i32, %arg1: i32) -> (i32, i32, i32) {
    %c0_i32 = arith.constant 0 : i32
    %c0_i32_0 = arith.constant 0 : i32
    return %arg0, %c0_i32, %arg1 : i32, i32, i32
  }
  func.func @transform_1(%arg0: i32, %arg1: i32) -> (i32, i32, i32) {
    %c0_i32 = arith.constant 0 : i32
    %c0_i32_0 = arith.constant 0 : i32
    %c0_i32_1 = arith.constant 0 : i32
    return %arg0, %c0_i32, %c0_i32_0 : i32, i32, i32
  }
  func.func @transform_2(%arg0: i32, %arg1: i32) -> (i32, i32, i32) {
    %c0_i32 = arith.constant 0 : i32
    %c0_i32_0 = arith.constant 0 : i32
    %c0_i32_1 = arith.constant 0 : i32
    return %arg0, %c0_i32, %c0_i32_0 : i32, i32, i32
  }
  func.func @transform_3(%arg0: i32, %arg1: i32) -> (i32, i32, i32) {
    %c0_i32 = arith.constant 0 : i32
    %c0_i32_0 = arith.constant 0 : i32
    return %arg0, %c0_i32, %arg1 : i32, i32, i32
  }
}

</mosaic_0001>

<llo_original>
// kernel: tpu_custom_call.1
$region0: #{tpu_custom_call.1}
  #allocation0 [shape = 'u32[]', space=smem, size = 0x4, offset = 0x4, fixed_abs, tag = 'smem constant byte address 0x4 - core index']
  #allocation1 [shape = 'u32[144,128]{1,0:T(1,128)}', space=vmem, size = 0x12000, scoped, tag = 'internal scratch']
  %s0 = inlined_call_operand.hbm [shape: f32[2,64,16], index: 0, kind: input, shape index: {}]
  %s1 = inlined_call_operand.hbm [shape: f32[2,64,16], index: 1, kind: input, shape index: {}]
  %s2 = inlined_call_operand.hbm [shape: f32[2,64,16], index: 2, kind: input, shape index: {}]
  %s3 = inlined_call_operand.hbm [shape: f32[2,64,16], index: 3, kind: output, shape index: {}]
  %s4 = sld [smem:[#allocation0]]
  $region57: #{tpu_custom_call.1} parent=0
    _
  %s6 = ssub.s32 1, %s4
  %s7 = scalar_select 0, %s6, %s4
  $region1: #{tpu_custom_call.1} parent=0
    #allocation2 [shape = 'u8[65536]{0}', space=vmem, size = 0x10000, scoped, tag = 'input window, operand 0']
    #allocation3 [shape = 's32[2]{0}', space=sflag, size = 0x8, scoped, tag = 'scoped memory for tpu_custom_call.1']
    #allocation4 [shape = 's32[2]{0}', space=sflag, size = 0x8, scoped, tag = 'scoped memory for tpu_custom_call.1']
    #allocation5 [shape = 'u8[65536]{0}', space=vmem, size = 0x10000, scoped, tag = 'input window, operand 1']
    #allocation6 [shape = 's32[2]{0}', space=sflag, size = 0x8, scoped, tag = 'scoped memory for tpu_custom_call.1']
    #allocation7 [shape = 'u8[65536]{0}', space=vmem, size = 0x10000, scoped, tag = 'input window, operand 2']
    #allocation8 [shape = 'u8[65536]{0}', space=vmem, size = 0x10000, scoped, tag = 'output window, operand 0']
    %8 = vsyncpa [#allocation3], 0
    %s9 = scalar_lea.sflag [#allocation3], 1
    %10 = vsyncpa %s9, 0
    %11 = vsyncpa [#allocation6], 0
    %s12 = scalar_lea.sflag [#allocation6], 1
    %13 = vsyncpa %s12, 0
    %14 = vsyncpa [#allocation4], 0
    %s15 = scalar_lea.sflag [#allocation4], 1
    %16 = vsyncpa %s15, 0
    loop: start=0, step=1, limit=4
    $region2: #{tpu_custom_call.1} parent=1 // loop_pre_header
      _
    $region3: #{tpu_custom_call.1} parent=1 // loop_header
      %s18 = sphi 0, %s22
      %p19 = scmp.ge.s32.totalorder %s18, 4
      %s25 = sphi 0, %s37
      %s26 = sphi 0, %s33
      %s27 = sphi 0, %s25
      %s28 = sphi 0, %s26
      %s29 = sphi 0, %s27
      %s30 = sphi 0, %s28
      %s42 = sphi 0, %s44
      %s45 = sphi 0, %s42
      %s46 = sphi 0, %s45
      %s62 = sphi 0, %s46
      %s68 = sphi 0, %s70
      %s71 = sphi 0, %s68
      %s72 = sphi 0, %s71
      %s88 = sphi 0, %s72
      %s94 = sphi 0, %s96
      %s97 = sphi 0, %s94
      %s98 = sphi 0, %s97
      %s114 = sphi 0, %s98
      %s122 = sphi 0, %s124
      %s125 = sphi 0, %s122
      %s126 = sphi 0, %s125
      %s142 = sphi 0, %s126
    $region4: #{tpu_custom_call.1} parent=1 // loop_header_branch
      %21 = sbr.rel (%p19) target = $region8
    $region5: #{tpu_custom_call.1} parent=1 // loop_body
      %s23 = ssub.s32 %s18, 1
      %s24 = ssub.s32 %s18, 2
      %s31 = sadd.s32 1, %s26
      %p32 = scmp.ge.s32.totalorder %s31, 1
      %s33 = scalar_select %p32, 0, %s31
      %s34 = sadd.s32 1, %s25
      %s35 = scalar_select %p32, %s34, %s25
      %p36 = scmp.ge.s32.totalorder %s35, 2
      %s37 = scalar_select %p36, 0, %s35
      %s38 = ssub.s32 %s25, %s37
      %s39 = ssub.s32 %s26, %s33
      %s40 = sor.u32 %s38, %s39
      %p41 = scmp.eq.s32.totalorder %s40, 0
      %s43 = sadd.s32 %s42, 1
      %s44 = scalar_select %p41, %s42, %s43
      %p47 = pneg %p41
      %p48 = scmp.eq.s32.totalorder %s18, 1
      %p49 = por %p47, %p48
      %p50 = scmp.ne.s32.totalorder %s42, %s45
      %p51 = scmp.eq.s32.totalorder %s18, 0
      %p52 = por %p50, %p51
      %p53 = scmp.ne.s32.totalorder %s42, %s45
      %p54 = scmp.eq.s32.totalorder %s23, 1
      %p55 = por %p53, %p54
      %p56 = scmp.ne.s32.totalorder %s45, %s46
      %p57 = scmp.eq.s32.totalorder %s23, 0
      %p58 = por %p56, %p57
      %p59 = scmp.ne.s32.totalorder %s45, %s46
      %p60 = scmp.eq.s32.totalorder %s24, 1
      %p61 = por %p59, %p60
      %p63 = scmp.ne.s32.totalorder %s46, %s62
      %p64 = scmp.eq.s32.totalorder %s24, 0
      %p65 = por %p63, %p64
      %s66 = ssub.s32 %s25, %s37
      %p67 = scmp.eq.s32.totalorder %s66, 0
      %s69 = sadd.s32 %s68, 1
      %s70 = scalar_select %p67, %s68, %s69
      %p73 = pneg %p67
      %p74 = scmp.eq.s32.totalorder %s18, 1
      %p75 = por %p73, %p74
      %p76 = scmp.ne.s32.totalorder %s68, %s71
      %p77 = scmp.eq.s32.totalorder %s18, 0
      %p78 = por %p76, %p77
      %p79 = scmp.ne.s32.totalorder %s68, %s71
      %p80 = scmp.eq.s32.totalorder %s23, 1
      %p81 = por %p79, %p80
      %p82 = scmp.ne.s32.totalorder %s71, %s72
      %p83 = scmp.eq.s32.totalorder %s23, 0
      %p84 = por %p82, %p83
      %p85 = scmp.ne.s32.totalorder %s71, %s72
      %p86 = scmp.eq.s32.totalorder %s24, 1
      %p87 = por %p85, %p86
      %p89 = scmp.ne.s32.totalorder %s72, %s88
      %p90 = scmp.eq.s32.totalorder %s24, 0
      %p91 = por %p89, %p90
      %s92 = ssub.s32 %s25, %s37
      %p93 = scmp.eq.s32.totalorder %s92, 0
      %s95 = sadd.s32 %s94, 1
      %s96 = scalar_select %p93, %s94, %s95
      %p99 = pneg %p93
      %p100 = scmp.eq.s32.totalorder %s18, 1
      %p101 = por %p99, %p100
      %p102 = scmp.ne.s32.totalorder %s94, %s97
      %p103 = scmp.eq.s32.totalorder %s18, 0
      %p104 = por %p102, %p103
      %p105 = scmp.ne.s32.totalorder %s94, %s97
      %p106 = scmp.eq.s32.totalorder %s23, 1
      %p107 = por %p105, %p106
      %p108 = scmp.ne.s32.totalorder %s97, %s98
      %p109 = scmp.eq.s32.totalorder %s23, 0
      %p110 = por %p108, %p109
      %p111 = scmp.ne.s32.totalorder %s97, %s98
      %p112 = scmp.eq.s32.totalorder %s24, 1
      %p113 = por %p111, %p112
      %p115 = scmp.ne.s32.totalorder %s98, %s114
      %p116 = scmp.eq.s32.totalorder %s24, 0
      %p117 = por %p115, %p116
      %s118 = ssub.s32 %s25, %s37
      %s119 = ssub.s32 %s26, %s33
      %s120 = sor.u32 %s118, %s119
      %p121 = scmp.eq.s32.totalorder %s120, 0
      %s123 = sadd.s32 %s122, 1
      %s124 = scalar_select %p121, %s122, %s123
      %p127 = pneg %p121
      %p128 = scmp.eq.s32.totalorder %s18, 1
      %p129 = por %p127, %p128
      %p130 = scmp.ne.s32.totalorder %s122, %s125
      %p131 = scmp.eq.s32.totalorder %s18, 0
      %p132 = por %p130, %p131
      %p133 = scmp.ne.s32.totalorder %s122, %s125
      %p134 = scmp.eq.s32.totalorder %s23, 1
      %p135 = por %p133, %p134
      %p136 = scmp.ne.s32.totalorder %s125, %s126
      %p137 = scmp.eq.s32.totalorder %s23, 0
      %p138 = por %p136, %p137
      %p139 = scmp.ne.s32.totalorder %s125, %s126
      %p140 = scmp.eq.s32.totalorder %s24, 1
      %p141 = por %p139, %p140
      %p143 = scmp.ne.s32.totalorder %s126, %s142
      %p144 = scmp.eq.s32.totalorder %s24, 0
      %p145 = por %p143, %p144
      %p146 = scmp.le.s32.totalorder 1, %s18
      %p147 = scmp.lt.s32.totalorder %s18, 3
      %p148 = pnand %p146, %p147
      %p149 = pneg %p148
      // Predicated region
      $region9: #{tpu_custom_call.1} parent=5 // pred_check
        _
      $region10: #{tpu_custom_call.1} parent=5 // pred_check_branch
        %151 = sbr.rel (%p148) target = $region12
      $region11: #{tpu_custom_call.1} parent=5 // pred_region
        %s152 = ssub.s32 %s18, 1
      $region12: #{tpu_custom_call.1} parent=5 // pred_fallthru
        _
      %p153 = scmp.lt.s32.totalorder %s18, 2
      // Predicated region
      $region13: #{tpu_custom_call.1} parent=5 // pred_check
        %p154 = pneg %p153
      $region14: #{tpu_custom_call.1} parent=5 // pred_check_branch
        %156 = sbr.rel (%p154) target = $region16
      $region15: #{tpu_custom_call.1} parent=5 // pred_region
        // Predicated region
        $region17: #{tpu_custom_call.1} parent=15 // pred_check
          %p157 = pneg %p52
        $region18: #{tpu_custom_call.1} parent=15 // pred_check_branch
          %159 = sbr.rel (%p157) target = $region20
        $region19: #{tpu_custom_call.1} parent=15 // pred_region
          %s160 = sand.u32 %s42, 1
          %s161 = scalar_lea.sflag [#allocation3], %s160
          %s162 = sand.u32 %s42, 1
          %s163 = smul.addr %s162, 64
          %s164 = scalar_lea.vmem [#allocation2], %s163
          %s166 = ssub.s32 1024, 1024
          %167 = vsyncadd %s161, %s166
          %s168 = smul.addr %s25, 8
          %s169 = sadd.s32 %s26, %s168
          %s170 = smul.addr %s169, 128
          %s171 = scalar_lea.hbm %s0, %s170
          %s172 = sshll.u32 %s164, 4
          %s173 = int_to_ptr.vmem [resolvable:$true] %s172
          %178 = dma.hbm_to_vmem [thread:$0]  %s171, 1024, %s173, %s161, 128, 128, 8
        $region20: #{tpu_custom_call.1} parent=15 // pred_fallthru
          _
        // Predicated region
        $region21: #{tpu_custom_call.1} parent=15 // pred_check
          %p179 = pneg %p78
        $region22: #{tpu_custom_call.1} parent=15 // pred_check_branch
          %181 = sbr.rel (%p179) target = $region24
        $region23: #{tpu_custom_call.1} parent=15 // pred_region
          %s182 = sand.u32 %s18, 1
          %s183 = scalar_lea.sflag [#allocation6], %s182
          %s184 = sand.u32 %s68, 1
          %s185 = smul.addr %s184, 64
          %s186 = scalar_lea.vmem [#allocation5], %s185
          %s188 = ssub.s32 1024, 1024
          %189 = vsyncadd %s183, %s188
          %s190 = smul.addr %s25, 8
          %s191 = smul.addr %s190, 128
          %s192 = scalar_lea.hbm %s1, %s191
          %s193 = sshll.u32 %s186, 4
          %s194 = int_to_ptr.vmem [resolvable:$true] %s193
          %199 = dma.hbm_to_vmem [thread:$0]  %s192, 1024, %s194, %s183, 128, 128, 8
        $region24: #{tpu_custom_call.1} parent=15 // pred_fallthru
          _
        // Predicated region
        $region25: #{tpu_custom_call.1} parent=15 // pred_check
          %p200 = pneg %p104
        $region26: #{tpu_custom_call.1} parent=15 // pred_check_branch
          %202 = sbr.rel (%p200) target = $region28
        $region27: #{tpu_custom_call.1} parent=15 // pred_region
          %s203 = sand.u32 %s18, 1
          %s204 = scalar_lea.sflag [#allocation6], %s203
          %s205 = sand.u32 %s94, 1
          %s206 = smul.addr %s205, 64
          %s207 = scalar_lea.vmem [#allocation7], %s206
          %s209 = ssub.s32 1024, 1024
          %210 = vsyncadd %s204, %s209
          %s211 = smul.addr %s25, 8
          %s212 = smul.addr %s211, 128
          %s213 = scalar_lea.hbm %s2, %s212
          %s214 = sshll.u32 %s207, 4
          %s215 = int_to_ptr.vmem [resolvable:$true] %s214
          %220 = dma.hbm_to_vmem [thread:$0]  %s213, 1024, %s215, %s204, 128, 128, 8
        $region28: #{tpu_custom_call.1} parent=15 // pred_fallthru
          _
      $region16: #{tpu_custom_call.1} parent=5 // pred_fallthru
        _
      %p221 = scmp.le.s32.totalorder 1, %s18
      %p222 = scmp.lt.s32.totalorder %s18, 3
      %p223 = pnand %p221, %p222
      %p224 = pneg %p223
      // Predicated region
      $region29: #{tpu_custom_call.1} parent=5 // pred_check
        _
      $region30: #{tpu_custom_call.1} parent=5 // pred_check_branch
        %226 = sbr.rel (%p223) target = $region32
      $region31: #{tpu_custom_call.1} parent=5 // pred_region
        %s227 = ssub.s32 %s18, 1
        %s228 = sand.u32 %s45, 1
        %s229 = scalar_lea.sflag [#allocation3], %s228
        %s230 = sand.u32 %s45, 1
        %s231 = smul.addr %s230, 64
        %s232 = scalar_lea.vmem [#allocation2], %s231
        // Predicated region
        $region33: #{tpu_custom_call.1} parent=31 // pred_check
          %p233 = pneg %p58
        $region34: #{tpu_custom_call.1} parent=31 // pred_check_branch
          %235 = sbr.rel (%p233) target = $region36
        $region35: #{tpu_custom_call.1} parent=31 // pred_region
          %236 = dma.done %s229, 1024
        $region36: #{tpu_custom_call.1} parent=31 // pred_fallthru
          _
        %s237 = sand.u32 %s23, 1
        %s238 = scalar_lea.sflag [#allocation6], %s237
        %s239 = sand.u32 %s71, 1
        %s240 = smul.addr %s239, 64
        %s241 = scalar_lea.vmem [#allocation5], %s240
        // Predicated region
        $region37: #{tpu_custom_call.1} parent=31 // pred_check
          %p242 = pneg %p84
        $region38: #{tpu_custom_call.1} parent=31 // pred_check_branch
          %244 = sbr.rel (%p242) target = $region40
        $region39: #{tpu_custom_call.1} parent=31 // pred_region
          %245 = dma.done %s238, 1024
        $region40: #{tpu_custom_call.1} parent=31 // pred_fallthru
          _
        %s246 = sand.u32 %s23, 1
        %s247 = scalar_lea.sflag [#allocation6], %s246
        %s248 = sand.u32 %s97, 1
        %s249 = smul.addr %s248, 64
        %s250 = scalar_lea.vmem [#allocation7], %s249
        // Predicated region
        $region41: #{tpu_custom_call.1} parent=31 // pred_check
          %p251 = pneg %p110
        $region42: #{tpu_custom_call.1} parent=31 // pred_check_branch
          %253 = sbr.rel (%p251) target = $region44
        $region43: #{tpu_custom_call.1} parent=31 // pred_region
          %254 = dma.done %s247, 1024
        $region44: #{tpu_custom_call.1} parent=31 // pred_fallthru
          _
        %s255 = sand.u32 %s45, 1
        %s256 = scalar_lea.sflag [#allocation3], %s255
        %s257 = sand.u32 %s45, 1
        %s258 = smul.addr %s257, 64
        %s259 = scalar_lea.vmem [#allocation2], %s258
        %p260 = pneg %p58
        %p261 = pneg %p55
        %s262 = sand.u32 %s23, 1
        %s263 = scalar_lea.sflag [#allocation6], %s262
        %s264 = sand.u32 %s71, 1
        %s265 = smul.addr %s264, 64
        %s266 = scalar_lea.vmem [#allocation5], %s265
        %p267 = pneg %p84
        %p268 = pneg %p81
        %s269 = sand.u32 %s23, 1
        %s270 = scalar_lea.sflag [#allocation6], %s269
        %s271 = sand.u32 %s97, 1
        %s272 = smul.addr %s271, 64
        %s273 = scalar_lea.vmem [#allocation7], %s272
        %p274 = pneg %p110
        %p275 = pneg %p107
        %p276 = pneg %p138
        %p277 = pneg %p135
        %s278 = sand.u32 %s125, 1
        %s279 = scalar_lea.sflag [#allocation4], %s278
        %s280 = sand.u32 %s125, 1
        %s281 = smul.addr %s280, 64
        %s282 = scalar_lea.vmem [#allocation8], %s281
        %v283 = vld [vmem:[%s232] sm:$0xff]
        %v284 = vld [vmem:[%s232 + $0x8] sm:$0xff]
        %v285 = vld [vmem:[%s232 + $0x10] sm:$0xff]
        %v286 = vld [vmem:[%s232 + $0x18] sm:$0xff]
        %v287 = vld [vmem:[%s232 + $0x20] sm:$0xff]
        %v288 = vld [vmem:[%s232 + $0x28] sm:$0xff]
        %v289 = vld [vmem:[%s232 + $0x30] sm:$0xff]
        %v290 = vld [vmem:[%s232 + $0x38] sm:$0xff]
        %v291 = vld [vmem:[%s241] sm:$0xff]
        %v292 = vld [vmem:[%s241 + $0x8] sm:$0xff]
        %v293 = vld [vmem:[%s241 + $0x10] sm:$0xff]
        %v294 = vld [vmem:[%s241 + $0x18] sm:$0xff]
        %v295 = vld [vmem:[%s241 + $0x20] sm:$0xff]
        %v296 = vld [vmem:[%s241 + $0x28] sm:$0xff]
        %v297 = vld [vmem:[%s241 + $0x30] sm:$0xff]
        %v298 = vld [vmem:[%s241 + $0x38] sm:$0xff]
        %299 = vxpose.xlu0.b32.start [1/16] %v283, 128
        %300 = vxpose.xlu0.b32.cont [2/16] %v284, 128
        %301 = vxpose.xlu0.b32.cont [3/16] %v285, 128
        %302 = vxpose.xlu0.b32.cont [4/16] %v286, 128
        %303 = vxpose.xlu0.b32.cont [5/16] %v287, 128
        %304 = vxpose.xlu0.b32.cont [6/16] %v288, 128
        %305 = vxpose.xlu0.b32.cont [7/16] %v289, 128
        %306 = vxpose.xlu0.b32.cont [8/16] %v290, 128
        %307 = vxpose.xlu0.b32.cont [9/16] 0.0, 128
        %308 = vxpose.xlu0.b32.cont [10/16] 0.0, 128
        %309 = vxpose.xlu0.b32.cont [11/16] 0.0, 128
        %310 = vxpose.xlu0.b32.cont [12/16] 0.0, 128
        %311 = vxpose.xlu0.b32.cont [13/16] 0.0, 128
        %312 = vxpose.xlu0.b32.cont [14/16] 0.0, 128
        %313 = vxpose.xlu0.b32.cont [15/16] 0.0, 128
        %314 = vxpose.xlu0.b32.end [16/16] 0.0, 128
        %v315 = vpop.trf.xlu0
        %v316 = vpop.trf.xlu0
        %v317 = vpop.trf.xlu0
        %v318 = vpop.trf.xlu0
        %v319 = vpop.trf.xlu0
        %v320 = vpop.trf.xlu0
        %v321 = vpop.trf.xlu0
        %v322 = vpop.trf.xlu0
        %v323 = vpop.trf.xlu0
        %v324 = vpop.trf.xlu0
        %v325 = vpop.trf.xlu0
        %v326 = vpop.trf.xlu0
        %v327 = vpop.trf.xlu0
        %v328 = vpop.trf.xlu0
        %v329 = vpop.trf.xlu0
        %v330 = vpop.trf.xlu0
        %vm331 = vcmask 523264
        %v333 = vsel %vm331, %v315, 0
        %v336 = vsel %vm331, %v316, 0
        %338 = vmatprep.subr.mxu0 0.0
        %339 = vmatpush1.msra.mxu0 %v291
        %340 = vmatprep.subr.mxu0 0.0
        %341 = vmatpush1.msra.mxu0 %v292
        %342 = vmatprep.subr.mxu0 0.0
        %343 = vmatpush1.msra.mxu0 %v293
        %344 = vmatprep.subr.mxu0 0.0
        %345 = vmatpush1.msra.mxu0 %v294
        %346 = vmatprep.subr.mxu0 0.0
        %347 = vmatpush1.msra.mxu0 %v295
        %348 = vmatprep.subr.mxu0 0.0
        %349 = vmatpush1.msra.mxu0 %v296
        %350 = vmatprep.subr.mxu0 0.0
        %351 = vmatpush1.msra.mxu0 %v297
        %352 = vmatprep.subr.mxu0 0.0
        %353 = vmatpush1.msra.mxu0 %v298
        %354 = vmatprep.subr.mxu0 0.0
        %355 = vmatpush1.msra.mxu0 0.0
        %356 = vmatprep.subr.mxu0 0.0
        %357 = vmatpush1.msra.mxu0 0.0
        %358 = vmatprep.subr.mxu0 0.0
        %359 = vmatpush1.msra.mxu0 0.0
        %360 = vmatprep.subr.mxu0 0.0
        %361 = vmatpush1.msra.mxu0 0.0
        %362 = vmatprep.subr.mxu0 0.0
        %363 = vmatpush1.msra.mxu0 0.0
        %364 = vmatprep.subr.mxu0 0.0
        %365 = vmatpush1.msra.mxu0 0.0
        %366 = vmatprep.subr.mxu0 0.0
        %367 = vmatpush1.msra.mxu0 0.0
        %368 = vmatprep.subr.mxu0 0.0
        %369 = vmatpush1.msra.mxu0 0.0
        %370 = vmatprep.subr.mxu0 0.0
        %371 = vmatpush1.msra.mxu0 0.0
        %372 = vmatprep.subr.mxu0 0.0
        %373 = vmatpush1.msra.mxu0 0.0
        %374 = vmatprep.subr.mxu0 0.0
        %375 = vmatpush1.msra.mxu0 0.0
        %376 = vmatprep.subr.mxu0 0.0
        %377 = vmatpush1.msra.mxu0 0.0
        %378 = vmatprep.subr.mxu0 0.0
        %379 = vmatpush1.msra.mxu0 0.0
        %380 = vmatprep.subr.mxu0 0.0
        %381 = vmatpush1.msra.mxu0 0.0
        %382 = vmatprep.subr.mxu0 0.0
        %383 = vmatpush1.msra.mxu0 0.0
        %384 = vmatprep.subr.mxu0 0.0
        %385 = vmatpush1.msra.mxu0 0.0
        %386 = vmatprep.subr.mxu0 0.0
        %387 = vmatpush1.msra.mxu0 0.0
        %388 = vmatprep.subr.mxu0 0.0
        %389 = vmatpush1.msra.mxu0 0.0
        %390 = vmatprep.subr.mxu0 0.0
        %391 = vmatpush1.msra.mxu0 0.0
        %392 = vmatprep.subr.mxu0 0.0
        %393 = vmatpush1.msra.mxu0 0.0
        %394 = vmatprep.subr.mxu0 0.0
        %395 = vmatpush1.msra.mxu0 0.0
        %396 = vmatprep.subr.mxu0 0.0
        %397 = vmatpush1.msra.mxu0 0.0
        %398 = vmatprep.subr.mxu0 0.0
        %399 = vmatpush1.msra.mxu0 0.0
        %400 = vmatprep.subr.mxu0 0.0
        %401 = vmatpush1.msra.mxu0 0.0
        %402 = vmatprep.mubr.f32.mxu0 0.0
        %403 = vmatmul.mubr.f32.gmra.mrb[0].mxu0 %v333
        %v404 = vpop.f32.mrb[0].mxu0
        %v405 = vadd.f32 0.0, %v404
        %v406 = vpop.f32.mrb[0].mxu0
        %407 = vmatprep.mubr.f32.mxu0 0.0
        %408 = vmatmul.mubr.f32.gmra.mrb[0].mxu0 %v336
        %v409 = vpop.f32.mrb[0].mxu0
        %v410 = vadd.f32 0.0, %v409
        %v411 = vpop.f32.mrb[0].mxu0
        %412 = vdwg.mxu0
        %vm413 = vcmask 130048
        %v414 = vsel %vm413, %v405, -inf
        %415 = vmax.xlane.f32.xlu0 %v414
        %v416 = vpop.xlane.xlu0 %415
        %v417 = vsel %vm413, %v410, -inf
        %418 = vmax.xlane.f32.xlu0 %v417
        %v419 = vpop.xlane.xlu0 %418
        %v420 = vsub.f32 %v405, %v416
        %v421 = vsub.f32 %v410, %v419
        %v422 = vmul.f32 %v420, 1.442695
        %v423 = vpow.pop %v422
        %v424 = vmul.f32 %v421, 1.442695
        %v425 = vpow.pop %v424
        %v426 = vsel %vm413, %v423, 0.0
        %427 = vadd.xlane.f32.xlu0 %v426
        %v428 = vpop.xlane.xlu0 %427
        %v429 = vsel %vm413, %v425, 0.0
        %430 = vadd.xlane.f32.xlu0 %v429
        %v431 = vpop.xlane.xlu0 %430
        %v432 = vrcp.pop %v428
        %v433 = vmul.f32 %v423, %v432
        %v434 = vrcp.pop %v431
        %v435 = vmul.f32 %v425, %v434
        %v436 = vld [vmem:[%s250] sm:$0xff]
        %v437 = vld [vmem:[%s250 + $0x8] sm:$0xff]
        %v438 = vld [vmem:[%s250 + $0x10] sm:$0xff]
        %v439 = vld [vmem:[%s250 + $0x18] sm:$0xff]
        %v440 = vld [vmem:[%s250 + $0x20] sm:$0xff]
        %v441 = vld [vmem:[%s250 + $0x28] sm:$0xff]
        %v442 = vld [vmem:[%s250 + $0x30] sm:$0xff]
        %v443 = vld [vmem:[%s250 + $0x38] sm:$0xff]
        %v445 = vsel %vm413, %v436, 0
        %v448 = vsel %vm413, %v437, 0
        %v451 = vsel %vm413, %v438, 0
        %v454 = vsel %vm413, %v439, 0
        %v457 = vsel %vm413, %v440, 0
        %v460 = vsel %vm413, %v441, 0
        %v463 = vsel %vm413, %v442, 0
        %v466 = vsel %vm413, %v443, 0
        %v469 = vsel %vm413, %v433, 0
        %v472 = vsel %vm413, %v435, 0
        %474 = vmatprep.subr.mxu0 0.0
        %475 = vmatpush1.xpose.msra.mxu0 %v469
        %476 = vmatprep.subr.mxu0 0.0
        %477 = vmatpush1.xpose.msra.mxu0 %v472
        %478 = vmatprep.subr.mxu0 0.0
        %479 = vmatpush1.xpose.msra.mxu0 0.0
        %480 = vmatprep.subr.mxu0 0.0
        %481 = vmatpush1.xpose.msra.mxu0 0.0
        %482 = vmatprep.subr.mxu0 0.0
        %483 = vmatpush1.xpose.msra.mxu0 0.0
        %484 = vmatprep.subr.mxu0 0.0
        %485 = vmatpush1.xpose.msra.mxu0 0.0
        %486 = vmatprep.subr.mxu0 0.0
        %487 = vmatpush1.xpose.msra.mxu0 0.0
        %488 = vmatprep.subr.mxu0 0.0
        %489 = vmatpush1.xpose.msra.mxu0 0.0
        %490 = vmatprep.subr.mxu0 0.0
        %491 = vmatpush1.xpose.msra.mxu0 0.0
        %492 = vmatprep.subr.mxu0 0.0
        %493 = vmatpush1.xpose.msra.mxu0 0.0
        %494 = vmatprep.subr.mxu0 0.0
        %495 = vmatpush1.xpose.msra.mxu0 0.0
        %496 = vmatprep.subr.mxu0 0.0
        %497 = vmatpush1.xpose.msra.mxu0 0.0
        %498 = vmatprep.subr.mxu0 0.0
        %499 = vmatpush1.xpose.msra.mxu0 0.0
        %500 = vmatprep.subr.mxu0 0.0
        %501 = vmatpush1.xpose.msra.mxu0 0.0
        %502 = vmatprep.subr.mxu0 0.0
        %503 = vmatpush1.xpose.msra.mxu0 0.0
        %504 = vmatprep.subr.mxu0 0.0
        %505 = vmatpush1.xpose.msra.mxu0 0.0
        %506 = vmatprep.subr.mxu0 0.0
        %507 = vmatpush1.xpose.msra.mxu0 0.0
        %508 = vmatprep.subr.mxu0 0.0
        %509 = vmatpush1.xpose.msra.mxu0 0.0
        %510 = vmatprep.subr.mxu0 0.0
        %511 = vmatpush1.xpose.msra.mxu0 0.0
        %512 = vmatprep.subr.mxu0 0.0
        %513 = vmatpush1.xpose.msra.mxu0 0.0
        %514 = vmatprep.subr.mxu0 0.0
        %515 = vmatpush1.xpose.msra.mxu0 0.0
        %516 = vmatprep.subr.mxu0 0.0
        %517 = vmatpush1.xpose.msra.mxu0 0.0
        %518 = vmatprep.subr.mxu0 0.0
        %519 = vmatpush1.xpose.msra.mxu0 0.0
        %520 = vmatprep.subr.mxu0 0.0
        %521 = vmatpush1.xpose.msra.mxu0 0.0
        %522 = vmatprep.subr.mxu0 0.0
        %523 = vmatpush1.xpose.msra.mxu0 0.0
        %524 = vmatprep.subr.mxu0 0.0
        %525 = vmatpush1.xpose.msra.mxu0 0.0
        %526 = vmatprep.subr.mxu0 0.0
        %527 = vmatpush1.xpose.msra.mxu0 0.0
        %528 = vmatprep.subr.mxu0 0.0
        %529 = vmatpush1.xpose.msra.mxu0 0.0
        %530 = vmatprep.subr.mxu0 0.0
        %531 = vmatpush1.xpose.msra.mxu0 0.0
        %532 = vmatprep.subr.mxu0 0.0
        %533 = vmatpush1.xpose.msra.mxu0 0.0
        %534 = vmatprep.subr.mxu0 0.0
        %535 = vmatpush1.xpose.msra.mxu0 0.0
        %536 = vmatprep.subr.mxu0 0.0
        %537 = vmatpush1.xpose.msra.mxu0 0.0
        %538 = vmatprep.mubr.f32.mxu0 0.0
        %539 = vmatmul.mubr.f32.gmra.mrb[0].mxu0 %v445
        %v540 = vpop.f32.mrb[0].mxu0
        %v541 = vadd.f32 0.0, %v540
        %v542 = vpop.f32.mrb[0].mxu0
        %543 = vmatprep.mubr.f32.mxu0 0.0
        %544 = vmatmul.mubr.f32.gmra.mrb[0].mxu0 %v448
        %v545 = vpop.f32.mrb[0].mxu0
        %v546 = vadd.f32 0.0, %v545
        %v547 = vpop.f32.mrb[0].mxu0
        %548 = vmatprep.mubr.f32.mxu0 0.0
        %549 = vmatmul.mubr.f32.gmra.mrb[0].mxu0 %v451
        %v550 = vpop.f32.mrb[0].mxu0
        %v551 = vadd.f32 0.0, %v550
        %v552 = vpop.f32.mrb[0].mxu0
        %553 = vmatprep.mubr.f32.mxu0 0.0
        %554 = vmatmul.mubr.f32.gmra.mrb[0].mxu0 %v454
        %v555 = vpop.f32.mrb[0].mxu0
        %v556 = vadd.f32 0.0, %v555
        %v557 = vpop.f32.mrb[0].mxu0
        %558 = vmatprep.mubr.f32.mxu0 0.0
        %559 = vmatmul.mubr.f32.gmra.mrb[0].mxu0 %v457
        %v560 = vpop.f32.mrb[0].mxu0
        %v561 = vadd.f32 0.0, %v560
        %v562 = vpop.f32.mrb[0].mxu0
        %563 = vmatprep.mubr.f32.mxu0 0.0
        %564 = vmatmul.mubr.f32.gmra.mrb[0].mxu0 %v460
        %v565 = vpop.f32.mrb[0].mxu0
        %v566 = vadd.f32 0.0, %v565
        %v567 = vpop.f32.mrb[0].mxu0
        %568 = vmatprep.mubr.f32.mxu0 0.0
        %569 = vmatmul.mubr.f32.gmra.mrb[0].mxu0 %v463
        %v570 = vpop.f32.mrb[0].mxu0
        %v571 = vadd.f32 0.0, %v570
        %v572 = vpop.f32.mrb[0].mxu0
        %573 = vmatprep.mubr.f32.mxu0 0.0
        %574 = vmatmul.mubr.f32.gmra.mrb[0].mxu0 %v466
        %v575 = vpop.f32.mrb[0].mxu0
        %v576 = vadd.f32 0.0, %v575
        %v577 = vpop.f32.mrb[0].mxu0
        %578 = vdwg.mxu0
        %579 = vst.msk [vmem:[%s282] sm:$0xff] %vm413, %v541
        %580 = vst.msk [vmem:[%s282 + $0x8] sm:$0xff] %vm413, %v546
        %581 = vst.msk [vmem:[%s282 + $0x10] sm:$0xff] %vm413, %v551
        %582 = vst.msk [vmem:[%s282 + $0x18] sm:$0xff] %vm413, %v556
        %583 = vst.msk [vmem:[%s282 + $0x20] sm:$0xff] %vm413, %v561
        %584 = vst.msk [vmem:[%s282 + $0x28] sm:$0xff] %vm413, %v566
        %585 = vst.msk [vmem:[%s282 + $0x30] sm:$0xff] %vm413, %v571
        %586 = vst.msk [vmem:[%s282 + $0x38] sm:$0xff] %vm413, %v576
        %s587 = sand.u32 %s125, 1
        %s588 = scalar_lea.sflag [#allocation4], %s587
        %s589 = sand.u32 %s125, 1
        %s590 = smul.addr %s589, 64
        %s591 = scalar_lea.vmem [#allocation8], %s590
        // Predicated region
        $region45: #{tpu_custom_call.1} parent=31 // pred_check
          %p592 = pneg %p135
        $region46: #{tpu_custom_call.1} parent=31 // pred_check_branch
          %594 = sbr.rel (%p592) target = $region48
        $region47: #{tpu_custom_call.1} parent=31 // pred_region
          %s596 = ssub.s32 1024, 1024
          %597 = vsyncadd %s588, %s596
          %s598 = smul.addr %s27, 8
          %s599 = sadd.s32 %s28, %s598
          %s600 = smul.addr %s599, 128
          %s601 = scalar_lea.hbm %s3, %s600
          %s602 = sshll.u32 %s591, 4
          %s603 = int_to_ptr.vmem [resolvable:$true] %s602
          %608 = dma.vmem_to_hbm [thread:$0]  %s603, 1024, %s601, %s588, 128, 128, 8
        $region48: #{tpu_custom_call.1} parent=31 // pred_fallthru
          _
      $region32: #{tpu_custom_call.1} parent=5 // pred_fallthru
        _
      %p609 = scmp.le.s32.totalorder 2, %s18
      // Predicated region
      $region49: #{tpu_custom_call.1} parent=5 // pred_check
        %p610 = pneg %p609
      $region50: #{tpu_custom_call.1} parent=5 // pred_check_branch
        %612 = sbr.rel (%p610) target = $region52
      $region51: #{tpu_custom_call.1} parent=5 // pred_region
        %s613 = ssub.s32 %s18, 2
        // Predicated region
        $region53: #{tpu_custom_call.1} parent=51 // pred_check
          %p614 = pneg %p141
        $region54: #{tpu_custom_call.1} parent=51 // pred_check_branch
          %616 = sbr.rel (%p614) target = $region56
        $region55: #{tpu_custom_call.1} parent=51 // pred_region
          %s617 = sand.u32 %s126, 1
          %s618 = scalar_lea.sflag [#allocation4], %s617
          %s619 = sand.u32 %s126, 1
          %s620 = smul.addr %s619, 64
          %s621 = scalar_lea.vmem [#allocation8], %s620
          %622 = dma.done %s618, 1024
        $region56: #{tpu_custom_call.1} parent=51 // pred_fallthru
          _
      $region52: #{tpu_custom_call.1} parent=5 // pred_fallthru
        _
    $region6: #{tpu_custom_call.1} parent=1 // loop_footer
      %s22 = sadd.s32 1, %s18
    $region7: #{tpu_custom_call.1} parent=1 // loop_footer_branch
      %17 = sbr.rel target = $region3
    $region8: #{tpu_custom_call.1} parent=1 // loop_exit
      _
    %623 = vsyncpa [#allocation3], 1
    %s624 = scalar_lea.sflag [#allocation3], 1
    %625 = vsyncpa %s624, 1
    %626 = vsyncpa [#allocation6], 1
    %s627 = scalar_lea.sflag [#allocation6], 1
    %628 = vsyncpa %s627, 1
    %629 = vsyncpa [#allocation4], 1
    %s630 = scalar_lea.sflag [#allocation4], 1
    %631 = vsyncpa %s630, 1

</llo_original>
